<compile_context>
chip_gen: v7x
topology: tpu7x:2x2x1
jax: 0.10.0
libtpu: 0.0.40
codegen_flags: <defaults>
</compile_context>

<pallas_src>
import jax
import jax.numpy as jnp
from jax.experimental import pallas as pl
from jax.experimental.pallas import tpu as pltpu


_SMALL_BYTES = 1 << 20        # below this, use a single whole-array block
_MAX_TILE_BYTES = 2 << 20     # cap per live tile (double-buffered in+out => ~4x live in VMEM)
_MAX_TILE_ROWS = 2048         # upper bound on rows per grid step
_VMEM_LIMIT = 32 * 1024 * 1024


def _mul_zero_kernel(x_ref, o_ref):
    # Elementwise multiply-by-zero (propagates NaN/Inf -> NaN, keeps -0.0, like x.mul(0.0)).
    o_ref[...] = x_ref[...] * jnp.array(0.0, dtype=x_ref.dtype)


def _sublane_multiple(dtype):
    # Native sublane packing: f32 -> 8, bf16 -> 16, int8/fp8 -> 32.
    return 8 * max(1, 4 // jnp.dtype(dtype).itemsize)


def _pick_lanes(total):
    """Largest lane-dense last-dim (multiple of 128) that divides the element count."""
    for k in (8192, 4096, 2048, 1024, 512, 256, 128):
        if total % k == 0:
            return k
    return None


def _pick_tile_rows(rows, lanes, dtype):
    """Rows per grid step: sublane-packing-aligned, tile <= _MAX_TILE_BYTES, <= _MAX_TILE_ROWS."""
    itemsize = jnp.dtype(dtype).itemsize
    mult = _sublane_multiple(dtype)
    tr = (_MAX_TILE_BYTES // (lanes * itemsize)) // mult * mult
    tr = max(mult, min(_MAX_TILE_ROWS, tr))
    if tr >= rows:
        return None  # whole slab already fits one block
    return tr


def _mul_zero_2d(x2d, tile_rows):
    """Run the mul-by-zero kernel on a 2D slab.

    tile_rows=None -> single whole-array block (small slabs).
    tile_rows=int  -> 1-D row grid, pipelined, parallel semantics (megacore sharding on v7x).
    """
    rows, lanes = x2d.shape
    if tile_rows is None:
        return pl.pallas_call(
            _mul_zero_kernel,
            out_shape=jax.ShapeDtypeStruct(x2d.shape, x2d.dtype),
            in_specs=[pl.BlockSpec(x2d.shape, lambda: (0, 0))],
            out_specs=pl.BlockSpec(x2d.shape, lambda: (0, 0)),
            compiler_params=pltpu.CompilerParams(vmem_limit_bytes=_VMEM_LIMIT),
        )(x2d)

    grid = (pl.cdiv(rows, tile_rows),)
    return pl.pallas_call(
        _mul_zero_kernel,
        out_shape=jax.ShapeDtypeStruct(x2d.shape, x2d.dtype),
        grid=grid,
        in_specs=[pl.BlockSpec((tile_rows, lanes), lambda i: (i, 0))],
        out_specs=pl.BlockSpec((tile_rows, lanes), lambda i: (i, 0)),
        compiler_params=pltpu.CompilerParams(
            dimension_semantics=("parallel",),
            vmem_limit_bytes=_VMEM_LIMIT,
        ),
    )(x2d)


def zero_forward(x, C_in, C_out, stride):
    """Forward pass of the Zero module. x is NCHW."""
    N, C, H, W = x.shape
    assert C == C_in, f"expected C_in={C_in}, got {C}"

    if C_in != C_out:
        # Pure zeros allocation: let XLA fuse / constant-fold the broadcast rather than
        # paying a standalone Pallas HBM write pass (stride ignored, as in the reference).
        return jnp.zeros((N, C_out, H, W), dtype=x.dtype)

    if stride != 1:
        # TODO(synk): fold the stride into the kernel's input read (strided pl.ds / index_map)
        # to avoid materializing this strided-slice intermediate in HBM.
        x = x[:, :, ::stride, ::stride]

    n, c, h, w = x.shape
    total = x.size
    itemsize = x.dtype.itemsize
    lanes = _pick_lanes(total)

    if lanes is None:
        # Element count not a multiple of 128 (irregular shapes): natural (N*C, H*W) layout;
        # block last dim == full array dim so layout rules hold. Row-tile only if large.
        x2d = x.reshape(n * c, h * w)
        tile_rows = None
        if total * itemsize > _SMALL_BYTES:
            tile_rows = _pick_tile_rows(n * c, h * w, x.dtype)
        out2d = _mul_zero_2d(x2d, tile_rows)
        return out2d.reshape(n, c, h, w)

    rows = total // lanes
    x2d = x.reshape(rows, lanes)      # free view (contiguous reshape), no HBM copy

    tile_rows = None
    if total * itemsize > _SMALL_BYTES:
        tile_rows = _pick_tile_rows(rows, lanes, x.dtype)

    out2d = _mul_zero_2d(x2d, tile_rows)
    return out2d.reshape(n, c, h, w)


if __name__ == "__main__":
    key = jax.random.PRNGKey(0)
    x = jax.random.normal(key, (2, 4, 16, 16), dtype=jnp.float32)

    # Case 1: C_in == C_out, stride == 1  -> zeros, same shape.
    y1 = jax.block_until_ready(zero_forward(x, 4, 4, 1))
    assert y1.shape == (2, 4, 16, 16) and y1.dtype == x.dtype
    assert bool(jnp.all(y1 == 0.0))

    # Case 2: C_in == C_out, stride == 2  -> zeros, strided spatial shape.
    y2 = jax.block_until_ready(zero_forward(x, 4, 4, 2))
    assert y2.shape == (2, 4, 8, 8) and y2.dtype == x.dtype
    assert bool(jnp.all(y2 == 0.0))

    # Case 3: C_in != C_out -> zeros with C_out channels, same spatial dims.
    y3 = jax.block_until_ready(zero_forward(x, 4, 8, 2))
    assert y3.shape == (2, 8, 16, 16) and y3.dtype == x.dtype
    assert bool(jnp.all(y3 == 0.0))

    # Case 4: x.mul(0.0) semantics preserved: NaN/Inf inputs -> NaN outputs.
    x_nan = x.at[0, 0, 0, 0].set(jnp.nan).at[1, 2, 3, 4].set(jnp.inf)
    y4 = jax.block_until_ready(zero_forward(x_nan, 4, 4, 1))
    assert bool(jnp.isnan(y4[0, 0, 0, 0])) and bool(jnp.isnan(y4[1, 2, 3, 4]))
    assert bool(jnp.all(jnp.where(jnp.isfinite(x_nan), y4 == 0.0, True)))

    # Case 5: larger activation (4 MiB) -> exercises the tiled, lane-dense, parallel-grid path.
    xl = jax.random.normal(key, (4, 64, 64, 64), dtype=jnp.float32)
    y5 = jax.block_until_ready(zero_forward(xl, 64, 64, 1))
    assert y5.shape == xl.shape and y5.dtype == xl.dtype
    assert bool(jnp.all(y5 == 0.0))

    # Case 6: element count not a multiple of 128 -> whole-block fallback.
    xo = jax.random.normal(key, (2, 3, 5, 7), dtype=jnp.float32)
    y6 = jax.block_until_ready(zero_forward(xo, 3, 3, 1))
    assert y6.shape == xo.shape and bool(jnp.all(y6 == 0.0))

    print("KERNEL_OK")
</pallas_src>

<mosaic_0001>
module attributes {stable_mosaic.version = 11 : i64} {
  func.func @_mul_zero_kernel(%arg0: memref<1x2048xf32, #tpu.memory_space<vmem>>, %arg1: memref<1x2048xf32, #tpu.memory_space<vmem>>) attributes {dimension_semantics = [], scalar_prefetch = 0 : i64, scratch_operands = 0 : i64, tpu.core_type = #tpu.core_type<tc>} {
    %c0 = arith.constant 0 : index
    %c0_0 = arith.constant 0 : index
    %0 = vector.load %arg0[%c0, %c0_0] : memref<1x2048xf32, #tpu.memory_space<vmem>>, vector<1x2048xf32>
    %cst = arith.constant 0.000000e+00 : f32
    %1 = vector.broadcast %cst : f32 to vector<1x2048xf32>
    %2 = arith.mulf %0, %1 : vector<1x2048xf32>
    %c0_1 = arith.constant 0 : index
    %c0_2 = arith.constant 0 : index
    %3 = vector.load %arg1[%c0_1, %c0_2] : memref<1x2048xf32, #tpu.memory_space<vmem>>, vector<1x2048xf32>
    tpu.vector_store %arg1[%c0_1, %c0_2], %2 {strides = array<i32>} : memref<1x2048xf32, #tpu.memory_space<vmem>>, vector<1x2048xf32>,
    return
  }
}

</mosaic_0001>

<llo_original>
// kernel: tpu_custom_call.1
$region0: #{tpu_custom_call.1}
  #allocation0 [shape = 'u32[]', space=smem, size = 0x4, offset = 0x4, fixed_abs, tag = 'smem constant byte address 0x4 - core index']
  #allocation1 [shape = 'u32[144,128]{1,0:T(1,128)}', space=vmem, size = 0x12000, scoped, tag = 'internal scratch']
  %s0 = inlined_call_operand.hbm [shape: f32[1,2048], index: 0, kind: input, shape index: {}]
  %s1 = inlined_call_operand.hbm [shape: f32[1,2048], index: 1, kind: output, shape index: {}]
  %s2 = sld [smem:[#allocation0]]
  $region18: #{tpu_custom_call.1} parent=0
    _
  %s4 = ssub.s32 1, %s2
  %s5 = scalar_select 0, %s4, %s2
  $region1: #{tpu_custom_call.1} parent=0
    #allocation2 [shape = 'u8[8192]{0}', space=vmem, size = 0x2000, scoped, tag = 'input window, operand 0, single buffered']
    #allocation3 [shape = 's32[1]{0}', space=sflag, size = 0x4, scoped, tag = 'scoped memory for tpu_custom_call.1']
    #allocation4 [shape = 's32[1]{0}', space=sflag, size = 0x4, scoped, tag = 'scoped memory for tpu_custom_call.1']
    #allocation5 [shape = 'u8[8192]{0}', space=vmem, size = 0x2000, scoped, tag = 'output window, operand 0, single buffered']
    %6 = vsyncpa [#allocation3], 0
    %7 = vsyncpa [#allocation4], 0
    // Predicated region
    $region2: #{tpu_custom_call.1} parent=1 // pred_check
      _
    $region3: #{tpu_custom_call.1} parent=1 // pred_check_branch
      %9 = sbr.rel (0) target = $region5
    $region4: #{tpu_custom_call.1} parent=1 // pred_region
      %s11 = ssub.s32 256, 256
      %12 = vsyncadd [#allocation3], %s11
      %s14 = sshll.u32 [#allocation2], 4
      %s15 = int_to_ptr.vmem [resolvable:$true] %s14
      %17 = dma.hbm_to_vmem [thread:$0]  %s0, 256, %s15, [#allocation3]
    $region5: #{tpu_custom_call.1} parent=1 // pred_fallthru
      _
    // Predicated region
    $region6: #{tpu_custom_call.1} parent=1 // pred_check
      _
    $region7: #{tpu_custom_call.1} parent=1 // pred_check_branch
      %19 = sbr.rel (0) target = $region9
    $region8: #{tpu_custom_call.1} parent=1 // pred_region
      %20 = dma.done [#allocation3], 256
    $region9: #{tpu_custom_call.1} parent=1 // pred_fallthru
      _
    %v21 = vld [vmem:[#allocation2] sm:$0xff]
    %v22 = vld [vmem:[#allocation2 + $0x8] sm:$0xff]
    %v23 = vmul.f32 %v21, 0.0
    %v24 = vmul.f32 %v22, 0.0
    %25 = vst [vmem:[#allocation5] sm:$0xff] %v23
    %26 = vst [vmem:[#allocation5 + $0x8] sm:$0xff] %v24
    // Predicated region
    $region10: #{tpu_custom_call.1} parent=1 // pred_check
      _
    $region11: #{tpu_custom_call.1} parent=1 // pred_check_branch
      %28 = sbr.rel (0) target = $region13
    $region12: #{tpu_custom_call.1} parent=1 // pred_region
      %s30 = ssub.s32 256, 256
      %31 = vsyncadd [#allocation4], %s30
      %s33 = sshll.u32 [#allocation5], 4
      %s34 = int_to_ptr.vmem [resolvable:$true] %s33
      %36 = dma.vmem_to_hbm [thread:$0]  %s34, 256, %s1, [#allocation4]
    $region13: #{tpu_custom_call.1} parent=1 // pred_fallthru
      _
    // Predicated region
    $region14: #{tpu_custom_call.1} parent=1 // pred_check
      _
    $region15: #{tpu_custom_call.1} parent=1 // pred_check_branch
      %38 = sbr.rel (0) target = $region17
    $region16: #{tpu_custom_call.1} parent=1 // pred_region
      %39 = dma.done [#allocation4], 256
    $region17: #{tpu_custom_call.1} parent=1 // pred_fallthru
      _
    %40 = vsyncpa [#allocation3], 1
    %41 = vsyncpa [#allocation4], 1

</llo_original>
